<compile_context>
chip_gen: v6e
topology: v6e:2x2x1
jax: 0.10.0
libtpu: 0.0.40
codegen_flags: <defaults>
</compile_context>

<pallas_src>
import jax
import jax.numpy as jnp
from jax.experimental import pallas as pl
from jax.experimental.pallas import tpu as pltpu

EMB_DIM = 32
NUM_USERS = 64
NUM_SUBREDDITS = 48


def _fused_kernel(uid_ref, sid_ref, pid_ref,          # scalar-prefetched ids (SMEM)
                  u_tbl_ref, v_tbl_ref, w_ref, b_ref,  # VMEM-resident params
                  score_ref, pol_ref,                  # outputs (B,1) / (P,1)
                  u_scr, v_scr, p_scr):                # VMEM gather scratch
    b = score_ref.shape[0]
    p = pol_ref.shape[0]

    # Gather the needed embedding rows from the VMEM-resident tables.
    # Static (unrolled) loop over the small batch; each read is a dynamic-row slice
    # keyed by an SMEM scalar -- no per-row HBM DMA, no per-row grid step.
    for i in range(b):
        u_scr[pl.ds(i, 1), :] = u_tbl_ref[pl.ds(uid_ref[i], 1), :]
        v_scr[pl.ds(i, 1), :] = v_tbl_ref[pl.ds(sid_ref[i], 1), :]
    for i in range(p):
        p_scr[pl.ds(i, 1), :] = u_tbl_ref[pl.ds(pid_ref[i], 1), :]

    # Vectorized skip-gram score: (B, D) multiply -> lane reduce -> sigmoid, one store.
    u = u_scr[...].astype(jnp.float32)
    v = v_scr[...].astype(jnp.float32)
    score_ref[...] = jax.nn.sigmoid(jnp.sum(u * v, axis=-1, keepdims=True))

    # Political head: Linear(D -> 1) kept on the VPU+XLU (a (P,32)@(32,1) matmul
    # would massively underfill the MXU and pay fill/drain latency).
    # TODO(synk): training-mode Dropout(p=0.5) on the gathered rows (pltpu.prng_random_bits);
    #             eval mode = identity, which is what the reference check exercises.
    e = p_scr[...].astype(jnp.float32)                 # (P, D)
    w = w_ref[...].astype(jnp.float32)                 # (1, D) broadcasts over P
    logits = jnp.sum(e * w, axis=-1, keepdims=True) + b_ref[...]
    pol_ref[...] = jax.nn.sigmoid(logits)


def u2s_fused(u_table, v_table, pol_w, pol_b, user_ids, subreddit_ids,
              political_user_ids):
    """Single fused pallas_call computing (score, political_predictions)."""
    b = user_ids.shape[0]
    p = political_user_ids.shape[0]
    n_u, d = u_table.shape
    n_v, _ = v_table.shape

    score, political = pl.pallas_call(
        _fused_kernel,
        out_shape=(
            jax.ShapeDtypeStruct((b, 1), jnp.float32),
            jax.ShapeDtypeStruct((p, 1), jnp.float32),
        ),
        grid_spec=pltpu.PrefetchScalarGridSpec(
            num_scalar_prefetch=3,          # user_ids, subreddit_ids, political ids -> SMEM
            grid=(1,),                      # whole batch in one step: no per-row dispatch
            in_specs=[
                pl.BlockSpec((n_u, d), lambda i, uid, sid, pid: (0, 0)),  # u_emb table
                pl.BlockSpec((n_v, d), lambda i, uid, sid, pid: (0, 0)),  # v_emb table
                pl.BlockSpec((1, d),   lambda i, uid, sid, pid: (0, 0)),  # Linear weight
                pl.BlockSpec((1, 1),   lambda i, uid, sid, pid: (0, 0)),  # Linear bias
            ],
            out_specs=(
                pl.BlockSpec((b, 1), lambda i, uid, sid, pid: (0, 0)),
                pl.BlockSpec((p, 1), lambda i, uid, sid, pid: (0, 0)),
            ),
            scratch_shapes=[
                pltpu.VMEM((b, d), jnp.float32),   # gathered user rows
                pltpu.VMEM((b, d), jnp.float32),   # gathered subreddit rows
                pltpu.VMEM((p, d), jnp.float32),   # gathered political-user rows
            ],
        ),
        compiler_params=pltpu.CompilerParams(dimension_semantics=("arbitrary",)),
    )(user_ids, subreddit_ids, political_user_ids, u_table, v_table, pol_w, pol_b)
    return score[:, 0], political               # (B,), (P, 1)


_u2s_fused_jit = jax.jit(u2s_fused)


def user2subreddit_forward(params, user_id, subreddit_id, political_user_ids,
                           compute_political=None):
    score, political = _u2s_fused_jit(
        params["u_emb"], params["v_emb"], params["pol_w"], params["pol_b"],
        user_id, subreddit_id, political_user_ids)
    if compute_political is None:
        # Mirrors the data-dependent PyTorch branch (host-side check). Pass a static
        # bool instead to keep the whole forward traceable/jittable end to end.
        compute_political = bool(jnp.sum(political_user_ids) > 0)
    return score, (political if compute_political else None)


def _reference_forward(params, user_id, subreddit_id, political_user_ids):
    emb_u = jnp.take(params["u_emb"], user_id, axis=0)
    emb_v = jnp.take(params["v_emb"], subreddit_id, axis=0)
    score = jax.nn.sigmoid(jnp.sum(emb_u * emb_v, axis=-1))
    emb_p = jnp.take(params["u_emb"], political_user_ids, axis=0)
    pol = jax.nn.sigmoid(emb_p @ params["pol_w"].T + params["pol_b"][0])
    return score, pol


if __name__ == "__main__":
    key = jax.random.PRNGKey(0)
    k1, k2, k3, k4, k5, k6, k7 = jax.random.split(key, 7)

    init_range = 0.5 / EMB_DIM
    params = {
        "u_emb": jax.random.uniform(k1, (NUM_USERS, EMB_DIM), jnp.float32,
                                    -init_range, init_range),
        "v_emb": jax.random.uniform(k2, (NUM_SUBREDDITS, EMB_DIM), jnp.float32,
                                    -init_range, init_range),
        "pol_w": jax.random.uniform(k3, (1, EMB_DIM), jnp.float32,
                                    -init_range, init_range),
        # nn.Linear default bias init (not overridden by init_emb): U(-1/sqrt(D), 1/sqrt(D))
        "pol_b": jax.random.uniform(k4, (1, 1), jnp.float32,
                                    -1.0 / (EMB_DIM ** 0.5), 1.0 / (EMB_DIM ** 0.5)),
    }

    B, P = 8, 4
    user_id = jax.random.randint(k5, (B,), 0, NUM_USERS, dtype=jnp.int32)
    subreddit_id = jax.random.randint(k6, (B,), 0, NUM_SUBREDDITS, dtype=jnp.int32)
    political_user_ids = jax.random.randint(k7, (P,), 1, NUM_USERS, dtype=jnp.int32)

    score, political = user2subreddit_forward(params, user_id, subreddit_id,
                                              political_user_ids)
    score = jax.block_until_ready(score)
    political = jax.block_until_ready(political)

    ref_score, ref_pol = _reference_forward(params, user_id, subreddit_id,
                                            political_user_ids)
    assert score.shape == (B,) and political.shape == (P, 1)
    assert jnp.allclose(score, ref_score, atol=1e-5, rtol=1e-5)
    assert jnp.allclose(political, ref_pol, atol=1e-5, rtol=1e-5)

    print("KERNEL_OK")
</pallas_src>

<mosaic_0001>
module attributes {stable_mosaic.version = 11 : i64} {
  func.func @_fused_kernel(%arg0: i32, %arg1: memref<8xi32, #tpu.memory_space<smem>>, %arg2: memref<8xi32, #tpu.memory_space<smem>>, %arg3: memref<4xi32, #tpu.memory_space<smem>>, %arg4: memref<64x32xf32, #tpu.memory_space<vmem>>, %arg5: memref<48x32xf32, #tpu.memory_space<vmem>>, %arg6: memref<1x32xf32, #tpu.memory_space<vmem>>, %arg7: memref<1x1xf32, #tpu.memory_space<vmem>>, %arg8: memref<8x1xf32, #tpu.memory_space<vmem>>, %arg9: memref<4x1xf32, #tpu.memory_space<vmem>>, %arg10: memref<8x32xf32, #tpu.memory_space<vmem>>, %arg11: memref<8x32xf32, #tpu.memory_space<vmem>>, %arg12: memref<4x32xf32, #tpu.memory_space<vmem>>) attributes {dimension_semantics = [#tpu.dimension_semantics<arbitrary>], iteration_bounds = array<i64: 1>, scalar_prefetch = 3 : i64, scratch_operands = 3 : i64, tpu.core_type = #tpu.core_type<tc>, window_params = [{pipeline_mode = #tpu.pipeline_mode<synchronous>, transform_indices = @transform_0, window_bounds = array<i64: 64, 32>}, {pipeline_mode = #tpu.pipeline_mode<synchronous>, transform_indices = @transform_1, window_bounds = array<i64: 48, 32>}, {pipeline_mode = #tpu.pipeline_mode<synchronous>, transform_indices = @transform_2, window_bounds = array<i64: 1, 32>}, {pipeline_mode = #tpu.pipeline_mode<synchronous>, transform_indices = @transform_3, window_bounds = array<i64: 1, 1>}, {pipeline_mode = #tpu.pipeline_mode<synchronous>, transform_indices = @transform_4, window_bounds = array<i64: 8, 1>}, {pipeline_mode = #tpu.pipeline_mode<synchronous>, transform_indices = @transform_5, window_bounds = array<i64: 4, 1>}]} {
    %c0 = arith.constant 0 : index
    %0 = memref.load %arg1[%c0] : memref<8xi32, #tpu.memory_space<smem>>
    %1 = arith.index_cast %0 : i32 to index
    %c0_0 = arith.constant 0 : index
    %2 = vector.load %arg4[%1, %c0_0] : memref<64x32xf32, #tpu.memory_space<vmem>>, vector<1x32xf32>
    %c0_1 = arith.constant 0 : index
    %c0_2 = arith.constant 0 : index
    %3 = vector.load %arg10[%c0_1, %c0_2] : memref<8x32xf32, #tpu.memory_space<vmem>>, vector<1x32xf32>
    tpu.vector_store %arg10[%c0_1, %c0_2], %2 {strides = array<i32>} : memref<8x32xf32, #tpu.memory_space<vmem>>, vector<1x32xf32>,
    %c0_3 = arith.constant 0 : index
    %4 = memref.load %arg2[%c0_3] : memref<8xi32, #tpu.memory_space<smem>>
    %5 = arith.index_cast %4 : i32 to index
    %c0_4 = arith.constant 0 : index
    %6 = vector.load %arg5[%5, %c0_4] : memref<48x32xf32, #tpu.memory_space<vmem>>, vector<1x32xf32>
    %c0_5 = arith.constant 0 : index
    %c0_6 = arith.constant 0 : index
    %7 = vector.load %arg11[%c0_5, %c0_6] : memref<8x32xf32, #tpu.memory_space<vmem>>, vector<1x32xf32>
    tpu.vector_store %arg11[%c0_5, %c0_6], %6 {strides = array<i32>} : memref<8x32xf32, #tpu.memory_space<vmem>>, vector<1x32xf32>,
    %c1 = arith.constant 1 : index
    %8 = memref.load %arg1[%c1] : memref<8xi32, #tpu.memory_space<smem>>
    %9 = arith.index_cast %8 : i32 to index
    %c0_7 = arith.constant 0 : index
    %10 = vector.load %arg4[%9, %c0_7] : memref<64x32xf32, #tpu.memory_space<vmem>>, vector<1x32xf32>
    %c1_8 = arith.constant 1 : index
    %c0_9 = arith.constant 0 : index
    %11 = vector.load %arg10[%c1_8, %c0_9] : memref<8x32xf32, #tpu.memory_space<vmem>>, vector<1x32xf32>
    tpu.vector_store %arg10[%c1_8, %c0_9], %10 {strides = array<i32>} : memref<8x32xf32, #tpu.memory_space<vmem>>, vector<1x32xf32>,
    %c1_10 = arith.constant 1 : index
    %12 = memref.load %arg2[%c1_10] : memref<8xi32, #tpu.memory_space<smem>>
    %13 = arith.index_cast %12 : i32 to index
    %c0_11 = arith.constant 0 : index
    %14 = vector.load %arg5[%13, %c0_11] : memref<48x32xf32, #tpu.memory_space<vmem>>, vector<1x32xf32>
    %c1_12 = arith.constant 1 : index
    %c0_13 = arith.constant 0 : index
    %15 = vector.load %arg11[%c1_12, %c0_13] : memref<8x32xf32, #tpu.memory_space<vmem>>, vector<1x32xf32>
    tpu.vector_store %arg11[%c1_12, %c0_13], %14 {strides = array<i32>} : memref<8x32xf32, #tpu.memory_space<vmem>>, vector<1x32xf32>,
    %c2 = arith.constant 2 : index
    %16 = memref.load %arg1[%c2] : memref<8xi32, #tpu.memory_space<smem>>
    %17 = arith.index_cast %16 : i32 to index
    %c0_14 = arith.constant 0 : index
    %18 = vector.load %arg4[%17, %c0_14] : memref<64x32xf32, #tpu.memory_space<vmem>>, vector<1x32xf32>
    %c2_15 = arith.constant 2 : index
    %c0_16 = arith.constant 0 : index
    %19 = vector.load %arg10[%c2_15, %c0_16] : memref<8x32xf32, #tpu.memory_space<vmem>>, vector<1x32xf32>
    tpu.vector_store %arg10[%c2_15, %c0_16], %18 {strides = array<i32>} : memref<8x32xf32, #tpu.memory_space<vmem>>, vector<1x32xf32>,
    %c2_17 = arith.constant 2 : index
    %20 = memref.load %arg2[%c2_17] : memref<8xi32, #tpu.memory_space<smem>>
    %21 = arith.index_cast %20 : i32 to index
    %c0_18 = arith.constant 0 : index
    %22 = vector.load %arg5[%21, %c0_18] : memref<48x32xf32, #tpu.memory_space<vmem>>, vector<1x32xf32>
    %c2_19 = arith.constant 2 : index
    %c0_20 = arith.constant 0 : index
    %23 = vector.load %arg11[%c2_19, %c0_20] : memref<8x32xf32, #tpu.memory_space<vmem>>, vector<1x32xf32>
    tpu.vector_store %arg11[%c2_19, %c0_20], %22 {strides = array<i32>} : memref<8x32xf32, #tpu.memory_space<vmem>>, vector<1x32xf32>,
    %c3 = arith.constant 3 : index
    %24 = memref.load %arg1[%c3] : memref<8xi32, #tpu.memory_space<smem>>
    %25 = arith.index_cast %24 : i32 to index
    %c0_21 = arith.constant 0 : index
    %26 = vector.load %arg4[%25, %c0_21] : memref<64x32xf32, #tpu.memory_space<vmem>>, vector<1x32xf32>
    %c3_22 = arith.constant 3 : index
    %c0_23 = arith.constant 0 : index
    %27 = vector.load %arg10[%c3_22, %c0_23] : memref<8x32xf32, #tpu.memory_space<vmem>>, vector<1x32xf32>
    tpu.vector_store %arg10[%c3_22, %c0_23], %26 {strides = array<i32>} : memref<8x32xf32, #tpu.memory_space<vmem>>, vector<1x32xf32>,
    %c3_24 = arith.constant 3 : index
    %28 = memref.load %arg2[%c3_24] : memref<8xi32, #tpu.memory_space<smem>>
    %29 = arith.index_cast %28 : i32 to index
    %c0_25 = arith.constant 0 : index
    %30 = vector.load %arg5[%29, %c0_25] : memref<48x32xf32, #tpu.memory_space<vmem>>, vector<1x32xf32>
    %c3_26 = arith.constant 3 : index
    %c0_27 = arith.constant 0 : index
    %31 = vector.load %arg11[%c3_26, %c0_27] : memref<8x32xf32, #tpu.memory_space<vmem>>, vector<1x32xf32>
    tpu.vector_store %arg11[%c3_26, %c0_27], %30 {strides = array<i32>} : memref<8x32xf32, #tpu.memory_space<vmem>>, vector<1x32xf32>,
    %c4 = arith.constant 4 : index
    %32 = memref.load %arg1[%c4] : memref<8xi32, #tpu.memory_space<smem>>
    %33 = arith.index_cast %32 : i32 to index
    %c0_28 = arith.constant 0 : index
    %34 = vector.load %arg4[%33, %c0_28] : memref<64x32xf32, #tpu.memory_space<vmem>>, vector<1x32xf32>
    %c4_29 = arith.constant 4 : index
    %c0_30 = arith.constant 0 : index
    %35 = vector.load %arg10[%c4_29, %c0_30] : memref<8x32xf32, #tpu.memory_space<vmem>>, vector<1x32xf32>
    tpu.vector_store %arg10[%c4_29, %c0_30], %34 {strides = array<i32>} : memref<8x32xf32, #tpu.memory_space<vmem>>, vector<1x32xf32>,
    %c4_31 = arith.constant 4 : index
    %36 = memref.load %arg2[%c4_31] : memref<8xi32, #tpu.memory_space<smem>>
    %37 = arith.index_cast %36 : i32 to index
    %c0_32 = arith.constant 0 : index
    %38 = vector.load %arg5[%37, %c0_32] : memref<48x32xf32, #tpu.memory_space<vmem>>, vector<1x32xf32>
    %c4_33 = arith.constant 4 : index
    %c0_34 = arith.constant 0 : index
    %39 = vector.load %arg11[%c4_33, %c0_34] : memref<8x32xf32, #tpu.memory_space<vmem>>, vector<1x32xf32>
    tpu.vector_store %arg11[%c4_33, %c0_34], %38 {strides = array<i32>} : memref<8x32xf32, #tpu.memory_space<vmem>>, vector<1x32xf32>,
    %c5 = arith.constant 5 : index
    %40 = memref.load %arg1[%c5] : memref<8xi32, #tpu.memory_space<smem>>
    %41 = arith.index_cast %40 : i32 to index
    %c0_35 = arith.constant 0 : index
    %42 = vector.load %arg4[%41, %c0_35] : memref<64x32xf32, #tpu.memory_space<vmem>>, vector<1x32xf32>
    %c5_36 = arith.constant 5 : index
    %c0_37 = arith.constant 0 : index
    %43 = vector.load %arg10[%c5_36, %c0_37] : memref<8x32xf32, #tpu.memory_space<vmem>>, vector<1x32xf32>
    tpu.vector_store %arg10[%c5_36, %c0_37], %42 {strides = array<i32>} : memref<8x32xf32, #tpu.memory_space<vmem>>, vector<1x32xf32>,
    %c5_38 = arith.constant 5 : index
    %44 = memref.load %arg2[%c5_38] : memref<8xi32, #tpu.memory_space<smem>>
    %45 = arith.index_cast %44 : i32 to index
    %c0_39 = arith.constant 0 : index
    %46 = vector.load %arg5[%45, %c0_39] : memref<48x32xf32, #tpu.memory_space<vmem>>, vector<1x32xf32>
    %c5_40 = arith.constant 5 : index
    %c0_41 = arith.constant 0 : index
    %47 = vector.load %arg11[%c5_40, %c0_41] : memref<8x32xf32, #tpu.memory_space<vmem>>, vector<1x32xf32>
    tpu.vector_store %arg11[%c5_40, %c0_41], %46 {strides = array<i32>} : memref<8x32xf32, #tpu.memory_space<vmem>>, vector<1x32xf32>,
    %c6 = arith.constant 6 : index
    %48 = memref.load %arg1[%c6] : memref<8xi32, #tpu.memory_space<smem>>
    %49 = arith.index_cast %48 : i32 to index
    %c0_42 = arith.constant 0 : index
    %50 = vector.load %arg4[%49, %c0_42] : memref<64x32xf32, #tpu.memory_space<vmem>>, vector<1x32xf32>
    %c6_43 = arith.constant 6 : index
    %c0_44 = arith.constant 0 : index
    %51 = vector.load %arg10[%c6_43, %c0_44] : memref<8x32xf32, #tpu.memory_space<vmem>>, vector<1x32xf32>
    tpu.vector_store %arg10[%c6_43, %c0_44], %50 {strides = array<i32>} : memref<8x32xf32, #tpu.memory_space<vmem>>, vector<1x32xf32>,
    %c6_45 = arith.constant 6 : index
    %52 = memref.load %arg2[%c6_45] : memref<8xi32, #tpu.memory_space<smem>>
    %53 = arith.index_cast %52 : i32 to index
    %c0_46 = arith.constant 0 : index
    %54 = vector.load %arg5[%53, %c0_46] : memref<48x32xf32, #tpu.memory_space<vmem>>, vector<1x32xf32>
    %c6_47 = arith.constant 6 : index
    %c0_48 = arith.constant 0 : index
    %55 = vector.load %arg11[%c6_47, %c0_48] : memref<8x32xf32, #tpu.memory_space<vmem>>, vector<1x32xf32>
    tpu.vector_store %arg11[%c6_47, %c0_48], %54 {strides = array<i32>} : memref<8x32xf32, #tpu.memory_space<vmem>>, vector<1x32xf32>,
    %c7 = arith.constant 7 : index
    %56 = memref.load %arg1[%c7] : memref<8xi32, #tpu.memory_space<smem>>
    %57 = arith.index_cast %56 : i32 to index
    %c0_49 = arith.constant 0 : index
    %58 = vector.load %arg4[%57, %c0_49] : memref<64x32xf32, #tpu.memory_space<vmem>>, vector<1x32xf32>
    %c7_50 = arith.constant 7 : index
    %c0_51 = arith.constant 0 : index
    %59 = vector.load %arg10[%c7_50, %c0_51] : memref<8x32xf32, #tpu.memory_space<vmem>>, vector<1x32xf32>
    tpu.vector_store %arg10[%c7_50, %c0_51], %58 {strides = array<i32>} : memref<8x32xf32, #tpu.memory_space<vmem>>, vector<1x32xf32>,
    %c7_52 = arith.constant 7 : index
    %60 = memref.load %arg2[%c7_52] : memref<8xi32, #tpu.memory_space<smem>>
    %61 = arith.index_cast %60 : i32 to index
    %c0_53 = arith.constant 0 : index
    %62 = vector.load %arg5[%61, %c0_53] : memref<48x32xf32, #tpu.memory_space<vmem>>, vector<1x32xf32>
    %c7_54 = arith.constant 7 : index
    %c0_55 = arith.constant 0 : index
    %63 = vector.load %arg11[%c7_54, %c0_55] : memref<8x32xf32, #tpu.memory_space<vmem>>, vector<1x32xf32>
    tpu.vector_store %arg11[%c7_54, %c0_55], %62 {strides = array<i32>} : memref<8x32xf32, #tpu.memory_space<vmem>>, vector<1x32xf32>,
    %c0_56 = arith.constant 0 : index
    %64 = memref.load %arg3[%c0_56] : memref<4xi32, #tpu.memory_space<smem>>
    %65 = arith.index_cast %64 : i32 to index
    %c0_57 = arith.constant 0 : index
    %66 = vector.load %arg4[%65, %c0_57] : memref<64x32xf32, #tpu.memory_space<vmem>>, vector<1x32xf32>
    %c0_58 = arith.constant 0 : index
    %c0_59 = arith.constant 0 : index
    %67 = vector.load %arg12[%c0_58, %c0_59] : memref<4x32xf32, #tpu.memory_space<vmem>>, vector<1x32xf32>
    tpu.vector_store %arg12[%c0_58, %c0_59], %66 {strides = array<i32>} : memref<4x32xf32, #tpu.memory_space<vmem>>, vector<1x32xf32>,
    %c1_60 = arith.constant 1 : index
    %68 = memref.load %arg3[%c1_60] : memref<4xi32, #tpu.memory_space<smem>>
    %69 = arith.index_cast %68 : i32 to index
    %c0_61 = arith.constant 0 : index
    %70 = vector.load %arg4[%69, %c0_61] : memref<64x32xf32, #tpu.memory_space<vmem>>, vector<1x32xf32>
    %c1_62 = arith.constant 1 : index
    %c0_63 = arith.constant 0 : index
    %71 = vector.load %arg12[%c1_62, %c0_63] : memref<4x32xf32, #tpu.memory_space<vmem>>, vector<1x32xf32>
    tpu.vector_store %arg12[%c1_62, %c0_63], %70 {strides = array<i32>} : memref<4x32xf32, #tpu.memory_space<vmem>>, vector<1x32xf32>,
    %c2_64 = arith.constant 2 : index
    %72 = memref.load %arg3[%c2_64] : memref<4xi32, #tpu.memory_space<smem>>
    %73 = arith.index_cast %72 : i32 to index
    %c0_65 = arith.constant 0 : index
    %74 = vector.load %arg4[%73, %c0_65] : memref<64x32xf32, #tpu.memory_space<vmem>>, vector<1x32xf32>
    %c2_66 = arith.constant 2 : index
    %c0_67 = arith.constant 0 : index
    %75 = vector.load %arg12[%c2_66, %c0_67] : memref<4x32xf32, #tpu.memory_space<vmem>>, vector<1x32xf32>
    tpu.vector_store %arg12[%c2_66, %c0_67], %74 {strides = array<i32>} : memref<4x32xf32, #tpu.memory_space<vmem>>, vector<1x32xf32>,
    %c3_68 = arith.constant 3 : index
    %76 = memref.load %arg3[%c3_68] : memref<4xi32, #tpu.memory_space<smem>>
    %77 = arith.index_cast %76 : i32 to index
    %c0_69 = arith.constant 0 : index
    %78 = vector.load %arg4[%77, %c0_69] : memref<64x32xf32, #tpu.memory_space<vmem>>, vector<1x32xf32>
    %c3_70 = arith.constant 3 : index
    %c0_71 = arith.constant 0 : index
    %79 = vector.load %arg12[%c3_70, %c0_71] : memref<4x32xf32, #tpu.memory_space<vmem>>, vector<1x32xf32>
    tpu.vector_store %arg12[%c3_70, %c0_71], %78 {strides = array<i32>} : memref<4x32xf32, #tpu.memory_space<vmem>>, vector<1x32xf32>,
    %c0_72 = arith.constant 0 : index
    %c0_73 = arith.constant 0 : index
    %80 = vector.load %arg10[%c0_72, %c0_73] : memref<8x32xf32, #tpu.memory_space<vmem>>, vector<8x32xf32>
    %c0_74 = arith.constant 0 : index
    %c0_75 = arith.constant 0 : index
    %81 = vector.load %arg11[%c0_74, %c0_75] : memref<8x32xf32, #tpu.memory_space<vmem>>, vector<8x32xf32>
    %82 = arith.mulf %80, %81 : vector<8x32xf32>
    %cst = arith.constant dense<0.000000e+00> : vector<8xf32>
    %83 = vector.multi_reduction <add>, %82, %cst [1] : vector<8x32xf32> to vector<8xf32>
    %84 = vector.shape_cast %83 : vector<8xf32> to vector<8x1xf32>
    %85 = arith.negf %84 : vector<8x1xf32>
    %86 = math.exp %85 : vector<8x1xf32>
    %cst_76 = arith.constant 1.000000e+00 : f32
    %87 = vector.broadcast %cst_76 : f32 to vector<8x1xf32>
    %88 = arith.addf %87, %86 : vector<8x1xf32>
    %89 = arith.divf %87, %88 : vector<8x1xf32>
    %c0_77 = arith.constant 0 : index
    %c0_78 = arith.constant 0 : index
    %90 = vector.load %arg8[%c0_77, %c0_78] : memref<8x1xf32, #tpu.memory_space<vmem>>, vector<8x1xf32>
    tpu.vector_store %arg8[%c0_77, %c0_78], %89 {strides = array<i32>} : memref<8x1xf32, #tpu.memory_space<vmem>>, vector<8x1xf32>,
    %c0_79 = arith.constant 0 : index
    %c0_80 = arith.constant 0 : index
    %91 = vector.load %arg12[%c0_79, %c0_80] : memref<4x32xf32, #tpu.memory_space<vmem>>, vector<4x32xf32>
    %c0_81 = arith.constant 0 : index
    %c0_82 = arith.constant 0 : index
    %92 = vector.load %arg6[%c0_81, %c0_82] : memref<1x32xf32, #tpu.memory_space<vmem>>, vector<1x32xf32>
    %93 = vector.broadcast %92 : vector<1x32xf32> to vector<4x32xf32>
    %94 = arith.mulf %91, %93 : vector<4x32xf32>
    %cst_83 = arith.constant dense<0.000000e+00> : vector<4xf32>
    %95 = vector.multi_reduction <add>, %94, %cst_83 [1] : vector<4x32xf32> to vector<4xf32>
    %96 = vector.shape_cast %95 : vector<4xf32> to vector<4x1xf32>
    %c0_84 = arith.constant 0 : index
    %c0_85 = arith.constant 0 : index
    %97 = vector.load %arg7[%c0_84, %c0_85] : memref<1x1xf32, #tpu.memory_space<vmem>>, vector<1x1xf32>
    %98 = vector.broadcast %97 : vector<1x1xf32> to vector<4x1xf32>
    %99 = arith.addf %96, %98 : vector<4x1xf32>
    %100 = arith.negf %99 : vector<4x1xf32>
    %101 = math.exp %100 : vector<4x1xf32>
    %cst_86 = arith.constant 1.000000e+00 : f32
    %102 = vector.broadcast %cst_86 : f32 to vector<4x1xf32>
    %103 = arith.addf %102, %101 : vector<4x1xf32>
    %104 = arith.divf %102, %103 : vector<4x1xf32>
    %c0_87 = arith.constant 0 : index
    %c0_88 = arith.constant 0 : index
    %105 = vector.load %arg9[%c0_87, %c0_88] : memref<4x1xf32, #tpu.memory_space<vmem>>, vector<4x1xf32>
    tpu.vector_store %arg9[%c0_87, %c0_88], %104 {strides = array<i32>} : memref<4x1xf32, #tpu.memory_space<vmem>>, vector<4x1xf32>,
    return
  }
  func.func @transform_0(%arg0: i32, %arg1: memref<8xi32, #tpu.memory_space<smem>>, %arg2: memref<8xi32, #tpu.memory_space<smem>>, %arg3: memref<4xi32, #tpu.memory_space<smem>>) -> (i32, i32) {
    %c0_i32 = arith.constant 0 : i32
    %c0_i32_0 = arith.constant 0 : i32
    %c0_i32_1 = arith.constant 0 : i32
    return %c0_i32, %c0_i32_0 : i32, i32
  }
  func.func @transform_1(%arg0: i32, %arg1: memref<8xi32, #tpu.memory_space<smem>>, %arg2: memref<8xi32, #tpu.memory_space<smem>>, %arg3: memref<4xi32, #tpu.memory_space<smem>>) -> (i32, i32) {
    %c0_i32 = arith.constant 0 : i32
    %c0_i32_0 = arith.constant 0 : i32
    %c0_i32_1 = arith.constant 0 : i32
    return %c0_i32, %c0_i32_0 : i32, i32
  }
  func.func @transform_2(%arg0: i32, %arg1: memref<8xi32, #tpu.memory_space<smem>>, %arg2: memref<8xi32, #tpu.memory_space<smem>>, %arg3: memref<4xi32, #tpu.memory_space<smem>>) -> (i32, i32) {
    %c0_i32 = arith.constant 0 : i32
    %c0_i32_0 = arith.constant 0 : i32
    %c0_i32_1 = arith.constant 0 : i32
    return %c0_i32, %c0_i32_0 : i32, i32
  }
  func.func @transform_3(%arg0: i32, %arg1: memref<8xi32, #tpu.memory_space<smem>>, %arg2: memref<8xi32, #tpu.memory_space<smem>>, %arg3: memref<4xi32, #tpu.memory_space<smem>>) -> (i32, i32) {
    %c0_i32 = arith.constant 0 : i32
    %c0_i32_0 = arith.constant 0 : i32
    %c0_i32_1 = arith.constant 0 : i32
    return %c0_i32, %c0_i32_0 : i32, i32
  }
  func.func @transform_4(%arg0: i32, %arg1: memref<8xi32, #tpu.memory_space<smem>>, %arg2: memref<8xi32, #tpu.memory_space<smem>>, %arg3: memref<4xi32, #tpu.memory_space<smem>>) -> (i32, i32) {
    %c0_i32 = arith.constant 0 : i32
    %c0_i32_0 = arith.constant 0 : i32
    %c0_i32_1 = arith.constant 0 : i32
    return %c0_i32, %c0_i32_0 : i32, i32
  }
  func.func @transform_5(%arg0: i32, %arg1: memref<8xi32, #tpu.memory_space<smem>>, %arg2: memref<8xi32, #tpu.memory_space<smem>>, %arg3: memref<4xi32, #tpu.memory_space<smem>>) -> (i32, i32) {
    %c0_i32 = arith.constant 0 : i32
    %c0_i32_0 = arith.constant 0 : i32
    %c0_i32_1 = arith.constant 0 : i32
    return %c0_i32, %c0_i32_0 : i32, i32
  }
}

</mosaic_0001>

<llo_original>
// kernel: u2s_fused.1
$region0: #{u2s_fused.1}
  #allocation0 [shape = 'u32[]', space=smem, size = 0x4, offset = 0x4, fixed_abs, tag = 'smem constant byte address 0x4 - core index']
  #allocation1 [shape = 'u32[144,128]{1,0:T(1,128)}', space=vmem, size = 0x12000, scoped, tag = 'internal scratch']
  #allocation2 [shape = 'f32[8,32]{1,0:T(8,128)}', space=vmem, size = 0x1000, scoped, tag = 'scratch operand']
  #allocation3 [shape = 'f32[8,32]{1,0:T(8,128)}', space=vmem, size = 0x1000, scoped, tag = 'scratch operand']
  #allocation4 [shape = 'f32[4,32]{1,0:T(4,128)}', space=vmem, size = 0x800, scoped, tag = 'scratch operand']
  #allocation5 [shape = 's32[1]{0}', space=sflag, size = 0x4, scoped, tag = 'scoped memory for u2s_fused.1']
  #allocation6 [shape = 'u8[512]{0}', space=smem, size = 0x200, scoped, tag = 'prefetched SMEM operand 0']
  #allocation7 [shape = 'u8[512]{0}', space=smem, size = 0x200, scoped, tag = 'prefetched SMEM operand 1']
  #allocation8 [shape = 'u8[512]{0}', space=smem, size = 0x200, scoped, tag = 'prefetched SMEM operand 2']
  #allocation9 [shape = 'f32[1,1]{1,0:T(1,128)S(1)}', space=vmem, size = 0x200, scoped, tag = 'scoped memory for u2s_fused.1']
  %s0 = inlined_call_operand.vmem [shape: s32[8], index: 0, kind: input, shape index: {}]
  %s1 = inlined_call_operand.vmem [shape: s32[8], index: 1, kind: input, shape index: {}]
  %s2 = inlined_call_operand.vmem [shape: s32[4], index: 2, kind: input, shape index: {}]
  %s3 = inlined_call_operand.vmem [shape: f32[64,32], index: 3, kind: input, shape index: {}]
  %s4 = inlined_call_operand.vmem [shape: f32[48,32], index: 4, kind: input, shape index: {}]
  %s5 = inlined_call_operand.vmem [shape: f32[1,32], index: 5, kind: input, shape index: {}]
  %s6 = inlined_call_operand.<no memory space> [shape: f32[1,1], index: 6, kind: input, shape index: {}]
  %s7 = inlined_call_operand.vmem [shape: f32[8,1], index: 7, kind: output, shape index: {0}]
  %s8 = inlined_call_operand.vmem [shape: f32[4,1], index: 8, kind: output, shape index: {1}]
  %9 = xla_tuple %s7, %s8
  %s10 = sld [smem:[#allocation0]]
  $region34: #{u2s_fused.1} parent=0
    _
  %s12 = ssub.s32 1, %s10
  %s13 = scalar_select 0, %s12, %s10
  %s14 = sshll.u32 %s0, 4
  %s15 = int_to_ptr.vmem [resolvable:$true] %s14
  %17 = dma.vmem_to_smem %s15, 16, [#allocation6], [#allocation5]
  %s18 = sshll.u32 %s1, 4
  %s19 = int_to_ptr.vmem [resolvable:$true] %s18
  %21 = dma.vmem_to_smem %s19, 16, [#allocation7], [#allocation5]
  %s22 = sshll.u32 %s2, 4
  %s23 = int_to_ptr.vmem [resolvable:$true] %s22
  %25 = dma.vmem_to_smem %s23, 16, [#allocation8], [#allocation5]
  %v26 = vstv %s6
  %27 = vst [vmem:[#allocation9] sm:$0x1] %v26
  %28 = dma.done [#allocation5], 48
  %29 = sfence
  // Predicated region
  $region2: #{u2s_fused.1} parent=0 // pred_check
    _
  $region3: #{u2s_fused.1} parent=0 // pred_check_branch
    %31 = sbr.rel (0) target = $region5
  $region4: #{u2s_fused.1} parent=0 // pred_region
    _
  $region5: #{u2s_fused.1} parent=0 // pred_fallthru
    _
  // Predicated region
  $region6: #{u2s_fused.1} parent=0 // pred_check
    _
  $region7: #{u2s_fused.1} parent=0 // pred_check_branch
    %33 = sbr.rel (0) target = $region9
  $region8: #{u2s_fused.1} parent=0 // pred_region
    _
  $region9: #{u2s_fused.1} parent=0 // pred_fallthru
    _
  // Predicated region
  $region10: #{u2s_fused.1} parent=0 // pred_check
    _
  $region11: #{u2s_fused.1} parent=0 // pred_check_branch
    %35 = sbr.rel (0) target = $region13
  $region12: #{u2s_fused.1} parent=0 // pred_region
    _
  $region13: #{u2s_fused.1} parent=0 // pred_fallthru
    _
  // Predicated region
  $region14: #{u2s_fused.1} parent=0 // pred_check
    _
  $region15: #{u2s_fused.1} parent=0 // pred_check_branch
    %37 = sbr.rel (0) target = $region17
  $region16: #{u2s_fused.1} parent=0 // pred_region
    _
  $region17: #{u2s_fused.1} parent=0 // pred_fallthru
    _
  %s38 = sld [smem:[#allocation6]]
  %s39 = scalar_lea.vmem %s3, %s38
  %v40 = vld [vmem:[%s39] sm:$0x1]
  %vm41 = vcmask 253952
  %42 = vst.msk [vmem:[#allocation2] sm:$0x1] %vm41, %v40
  %s43 = sld [smem:[#allocation7]]
  %s44 = scalar_lea.vmem %s4, %s43
  %v45 = vld [vmem:[%s44] sm:$0x1]
  %46 = vst.msk [vmem:[#allocation3] sm:$0x1] %vm41, %v45
  %s47 = sld [smem:[#allocation6 + $0x1]]
  %s48 = scalar_lea.vmem %s3, %s47
  %v49 = vld [vmem:[%s48] sm:$0x1]
  %50 = vst.msk [vmem:[#allocation2 + $0x1] sm:$0x1] %vm41, %v49
  %s51 = sld [smem:[#allocation7 + $0x1]]
  %s52 = scalar_lea.vmem %s4, %s51
  %v53 = vld [vmem:[%s52] sm:$0x1]
  %54 = vst.msk [vmem:[#allocation3 + $0x1] sm:$0x1] %vm41, %v53
  %s55 = sld [smem:[#allocation6 + $0x2]]
  %s56 = scalar_lea.vmem %s3, %s55
  %v57 = vld [vmem:[%s56] sm:$0x1]
  %58 = vst.msk [vmem:[#allocation2 + $0x2] sm:$0x1] %vm41, %v57
  %s59 = sld [smem:[#allocation7 + $0x2]]
  %s60 = scalar_lea.vmem %s4, %s59
  %v61 = vld [vmem:[%s60] sm:$0x1]
  %62 = vst.msk [vmem:[#allocation3 + $0x2] sm:$0x1] %vm41, %v61
  %s63 = sld [smem:[#allocation6 + $0x3]]
  %s64 = scalar_lea.vmem %s3, %s63
  %v65 = vld [vmem:[%s64] sm:$0x1]
  %66 = vst.msk [vmem:[#allocation2 + $0x3] sm:$0x1] %vm41, %v65
  %s67 = sld [smem:[#allocation7 + $0x3]]
  %s68 = scalar_lea.vmem %s4, %s67
  %v69 = vld [vmem:[%s68] sm:$0x1]
  %70 = vst.msk [vmem:[#allocation3 + $0x3] sm:$0x1] %vm41, %v69
  %s71 = sld [smem:[#allocation6 + $0x4]]
  %s72 = scalar_lea.vmem %s3, %s71
  %v73 = vld [vmem:[%s72] sm:$0x1]
  %74 = vst.msk [vmem:[#allocation2 + $0x4] sm:$0x1] %vm41, %v73
  %s75 = sld [smem:[#allocation7 + $0x4]]
  %s76 = scalar_lea.vmem %s4, %s75
  %v77 = vld [vmem:[%s76] sm:$0x1]
  %78 = vst.msk [vmem:[#allocation3 + $0x4] sm:$0x1] %vm41, %v77
  %s79 = sld [smem:[#allocation6 + $0x5]]
  %s80 = scalar_lea.vmem %s3, %s79
  %v81 = vld [vmem:[%s80] sm:$0x1]
  %82 = vst.msk [vmem:[#allocation2 + $0x5] sm:$0x1] %vm41, %v81
  %s83 = sld [smem:[#allocation7 + $0x5]]
  %s84 = scalar_lea.vmem %s4, %s83
  %v85 = vld [vmem:[%s84] sm:$0x1]
  %86 = vst.msk [vmem:[#allocation3 + $0x5] sm:$0x1] %vm41, %v85
  %s87 = sld [smem:[#allocation6 + $0x6]]
  %s88 = scalar_lea.vmem %s3, %s87
  %v89 = vld [vmem:[%s88] sm:$0x1]
  %90 = vst.msk [vmem:[#allocation2 + $0x6] sm:$0x1] %vm41, %v89
  %s91 = sld [smem:[#allocation7 + $0x6]]
  %s92 = scalar_lea.vmem %s4, %s91
  %v93 = vld [vmem:[%s92] sm:$0x1]
  %94 = vst.msk [vmem:[#allocation3 + $0x6] sm:$0x1] %vm41, %v93
  %s95 = sld [smem:[#allocation6 + $0x7]]
  %s96 = scalar_lea.vmem %s3, %s95
  %v97 = vld [vmem:[%s96] sm:$0x1]
  %98 = vst.msk [vmem:[#allocation2 + $0x7] sm:$0x1] %vm41, %v97
  %s99 = sld [smem:[#allocation7 + $0x7]]
  %s100 = scalar_lea.vmem %s4, %s99
  %v101 = vld [vmem:[%s100] sm:$0x1]
  %102 = vst.msk [vmem:[#allocation3 + $0x7] sm:$0x1] %vm41, %v101
  %s103 = sld [smem:[#allocation8]]
  %s104 = scalar_lea.vmem %s3, %s103
  %v105 = vld [vmem:[%s104] sm:$0x1]
  %106 = vst.msk [vmem:[#allocation4] sm:$0x1] %vm41, %v105
  %s107 = sld [smem:[#allocation8 + $0x1]]
  %s108 = scalar_lea.vmem %s3, %s107
  %v109 = vld [vmem:[%s108] sm:$0x1]
  %110 = vst.msk [vmem:[#allocation4 + $0x1] sm:$0x1] %vm41, %v109
  %s111 = sld [smem:[#allocation8 + $0x2]]
  %s112 = scalar_lea.vmem %s3, %s111
  %v113 = vld [vmem:[%s112] sm:$0x1]
  %114 = vst.msk [vmem:[#allocation4 + $0x2] sm:$0x1] %vm41, %v113
  %s115 = sld [smem:[#allocation8 + $0x3]]
  %s116 = scalar_lea.vmem %s3, %s115
  %v117 = vld [vmem:[%s116] sm:$0x1]
  %118 = vst.msk [vmem:[#allocation4 + $0x3] sm:$0x1] %vm41, %v117
  %v119 = vld [vmem:[#allocation2] sm:$0xff]
  %v120 = vld [vmem:[#allocation3] sm:$0xff]
  %v121 = vmul.f32 %v119, %v120
  %vm122 = vcmask 261120
  %v123 = vsel %vm122, %v121, 0.0
  %124 = vadd.xlane.f32.xlu0 %v123
  %v125 = vpop.xlane.xlu0 %124
  %v126 = vxor.u32 %v125, 2147483648
  %v127 = vmul.f32 %v126, 1.442695
  %v128 = vpow.pop %v127
  %v129 = vadd.f32 %v128, 1.0
  %v130 = vrcp.pop %v129
  %v131 = vmul.f32 1.0, %v130
  %vm132 = vcmask 7168
  %133 = vst.msk [vmem:[%s7] sm:$0xff] %vm132, %v131
  %v134 = vld [vmem:[#allocation4] sm:$0xf]
  %v135 = vld [vmem:[%s5] sm:$0x1]
  %v137 = vlaneseq
  %v138 = vshrl.u32 %v137, 7
  %v139 = vsub.s32 0, %v138
  %v140 = vrot.slane %v135, %v139
  %v142 = vmul.f32 %v134, %v140
  %vm143 = vcmask 257024
  %v144 = vsel %vm143, %v142, 0.0
  %145 = vadd.xlane.f32.xlu0 %v144
  %v146 = vpop.xlane.xlu0 %145
  %v147 = vld [vmem:[#allocation9] sm:$0x1]
  %v149 = vlaneseq
  %v150 = vshrl.u32 %v149, 7
  %v151 = vsub.s32 0, %v150
  %v152 = vrot.slane %v147, %v151
  %v154 = vadd.f32 %v146, %v152
  %v155 = vxor.u32 %v154, 2147483648
  %v156 = vmul.f32 %v155, 1.442695
  %v157 = vpow.pop %v156
  %v158 = vadd.f32 %v157, 1.0
  %v159 = vrcp.pop %v158
  %v160 = vmul.f32 1.0, %v159
  %vm161 = vcmask 3072
  %162 = vst.msk [vmem:[%s8] sm:$0xf] %vm161, %v160
  // Predicated region
  $region18: #{u2s_fused.1} parent=0 // pred_check
    _
  $region19: #{u2s_fused.1} parent=0 // pred_check_branch
    %164 = sbr.rel (0) target = $region21
  $region20: #{u2s_fused.1} parent=0 // pred_region
    _
  $region21: #{u2s_fused.1} parent=0 // pred_fallthru
    _
  // Predicated region
  $region22: #{u2s_fused.1} parent=0 // pred_check
    _
  $region23: #{u2s_fused.1} parent=0 // pred_check_branch
    %166 = sbr.rel (0) target = $region25
  $region24: #{u2s_fused.1} parent=0 // pred_region
    _
  $region25: #{u2s_fused.1} parent=0 // pred_fallthru
    _
  // Predicated region
  $region26: #{u2s_fused.1} parent=0 // pred_check
    _
  $region27: #{u2s_fused.1} parent=0 // pred_check_branch
    %168 = sbr.rel (0) target = $region29
  $region28: #{u2s_fused.1} parent=0 // pred_region
    _
  $region29: #{u2s_fused.1} parent=0 // pred_fallthru
    _
  // Predicated region
  $region30: #{u2s_fused.1} parent=0 // pred_check
    _
  $region31: #{u2s_fused.1} parent=0 // pred_check_branch
    %170 = sbr.rel (0) target = $region33
  $region32: #{u2s_fused.1} parent=0 // pred_region
    _
  $region33: #{u2s_fused.1} parent=0 // pred_fallthru
    _

</llo_original>
